<compile_context>
chip_gen: v6e
topology: v6e:2x2x1
jax: 0.10.0
libtpu: 0.0.40
codegen_flags: <defaults>
</compile_context>

<pallas_src>
import functools

import jax
import jax.numpy as jnp
from jax.experimental import pallas as pl
from jax.experimental.pallas import tpu as pltpu

IN_F, H1, H2, OUT_F = 34, 80, 30, 1


def _round_up(x, m):
    return (x + m - 1) // m * m


def _cdiv(a, b):
    return -(-a // b)


def _mlp_kernel(x_ref, w1_ref, b1_ref, w2_ref, b2_ref, w3_ref, b3_ref, o_ref,
                *, matmul_dtype):
    # fc1 + ReLU: bf16 (or f32) MXU operands, f32 accumulation, f32 bias/ReLU.
    x = x_ref[...].astype(matmul_dtype)
    h1 = jnp.dot(x, w1_ref[...], preferred_element_type=jnp.float32)
    h1 = jnp.maximum(h1 + b1_ref[...], 0.0)

    # fc2 + ReLU: only the dot operand is cast; elementwise stays f32.
    h2 = jnp.dot(h1.astype(matmul_dtype), w2_ref[...],
                 preferred_element_type=jnp.float32)
    h2 = jnp.maximum(h2 + b2_ref[...], 0.0)

    # dropout(eval) == identity.

    # fc3 + ReLU: out_features == 1, so skip a padded MXU matmul and use a
    # VPU multiply + XLU lane-reduction (f32; XLU slot is otherwise idle here).
    h3 = jnp.sum(h2 * w3_ref[...], axis=-1, keepdims=True)          # (tile, 1)
    o_ref[...] = jnp.maximum(h3 + b3_ref[...], 0.0).astype(o_ref.dtype)


def _choose_tile(B, tile_b):
    """Balanced batch tile: multiple of 8, >=2 (even) tiles for mid/large B."""
    tile_b = max(8, _round_up(tile_b, 8))
    num_tiles = _cdiv(B, tile_b)
    if B > 256 and num_tiles < 2:
        num_tiles = 2                       # feed both v7x TensorCores
    if num_tiles > 1 and num_tiles % 2:
        num_tiles += 1                      # even count -> no idle TC at the end
    return max(8, _round_up(_cdiv(B, num_tiles), 8))


def mlp_forward(x, params, *, tile_b=2048, matmul_dtype=jnp.bfloat16,
                min_pallas_batch=128):
    """x: (B, 34) float32 -> (B, 1) float32.

    params = (w1, b1, w2, b2, w3, b3); weights stored (in_features,
    out_features), i.e. transposed vs. PyTorch, so y = x @ W + b.
    """
    w1, b1, w2, b2, w3, b3 = params
    B = x.shape[0]

    w3_row = jnp.reshape(w3, (1, H2)).astype(jnp.float32)   # VPU path stays f32
    b3_2d = jnp.reshape(b3, (1, 1)).astype(jnp.float32)

    if B <= min_pallas_batch:
        # Tiny-batch fallback: custom-call dispatch + grid-step overhead would
        # dwarf the math; plain XLA fuses this trivially.
        h = jnp.maximum(jnp.dot(x.astype(matmul_dtype), w1.astype(matmul_dtype),
                                preferred_element_type=jnp.float32) + b1, 0.0)
        h = jnp.maximum(jnp.dot(h.astype(matmul_dtype), w2.astype(matmul_dtype),
                                preferred_element_type=jnp.float32) + b2, 0.0)
        return jnp.maximum(h @ w3.astype(jnp.float32) + b3_2d, 0.0)

    # One-time (tiny) wrapper-side cast of the resident matmul weights; the
    # streamed activation tile is cast inside the kernel.
    w1m = w1.astype(matmul_dtype)
    w2m = w2.astype(matmul_dtype)

    tile = _choose_tile(B, tile_b)
    num_tiles = _cdiv(B, tile)   # ragged tail handled by Pallas partial tiles

    def const(shape):
        # Full-array block, constant index_map: DMA'd once, resident across grid.
        return pl.BlockSpec(shape, lambda i: (0, 0))

    kernel = functools.partial(_mlp_kernel, matmul_dtype=matmul_dtype)

    return pl.pallas_call(
        kernel,
        out_shape=jax.ShapeDtypeStruct((B, OUT_F), jnp.float32),
        grid=(num_tiles,),
        in_specs=[
            pl.BlockSpec((tile, IN_F), lambda i: (i, 0)),   # x: streamed per tile
            const((IN_F, H1)),                              # w1 (resident)
            const((1, H1)),                                 # b1
            const((H1, H2)),                                # w2
            const((1, H2)),                                 # b2
            const((1, H2)),                                 # w3 row
            const((1, 1)),                                  # b3
        ],
        out_specs=pl.BlockSpec((tile, OUT_F), lambda i: (i, 0)),
        compiler_params=pltpu.CompilerParams(
            dimension_semantics=("parallel",),              # megacore on v7x
        ),
    )(x, w1m, b1, w2m, b2, w3_row, b3_2d)


def init_params(key):
    """Deterministic init matching PyTorch nn.Linear (stored transposed).

    PyTorch Linear default init: U(-1/sqrt(fan_in), +1/sqrt(fan_in)).
    """
    dims = [(IN_F, H1), (H1, H2), (H2, OUT_F)]
    params = []
    for fan_in, fan_out in dims:
        key, kw, kb = jax.random.split(key, 3)
        bound = 1.0 / jnp.sqrt(float(fan_in))
        w = jax.random.uniform(kw, (fan_in, fan_out), jnp.float32, -bound, bound)
        b = jax.random.uniform(kb, (1, fan_out), jnp.float32, -bound, bound)
        params.extend([w, b])
    return tuple(params)


def _reference(x, params, matmul_dtype=jnp.float32):
    """Pure-JAX reference applying the same operand casts / f32 accumulation."""
    w1, b1, w2, b2, w3, b3 = params
    h = jnp.maximum(jnp.dot(x.astype(matmul_dtype), w1.astype(matmul_dtype),
                            preferred_element_type=jnp.float32) + b1, 0.0)
    h = jnp.maximum(jnp.dot(h.astype(matmul_dtype), w2.astype(matmul_dtype),
                            preferred_element_type=jnp.float32) + b2, 0.0)
    return jnp.maximum(jnp.dot(h, w3.astype(jnp.float32),
                               preferred_element_type=jnp.float32)
                       + jnp.reshape(b3, (1, 1)), 0.0)


if __name__ == "__main__":
    key = jax.random.PRNGKey(0)
    key, kx1, kx2, kx3 = jax.random.split(key, 4)
    params = init_params(key)

    # 1) Tiny batch, f32 matmuls, force the Pallas path: tight tolerance.
    x_small = jax.random.normal(kx1, (8, IN_F), dtype=jnp.float32)
    out_small = mlp_forward(x_small, params, matmul_dtype=jnp.float32,
                            min_pallas_batch=0)
    jax.block_until_ready(out_small)
    assert out_small.shape == (8, 1), out_small.shape
    assert jnp.allclose(out_small, _reference(x_small, params, jnp.float32),
                        atol=1e-5, rtol=1e-5), "mismatch (B=8, f32)"

    # 2) Ragged mid batch, default bf16 MXU operands, 2 parallel tiles of 152.
    x_mid = jax.random.normal(kx2, (300, IN_F), dtype=jnp.float32)
    out_mid = mlp_forward(x_mid, params)
    jax.block_until_ready(out_mid)
    assert out_mid.shape == (300, 1), out_mid.shape
    assert jnp.allclose(out_mid, _reference(x_mid, params, jnp.bfloat16),
                        atol=1e-3, rtol=1e-3), "mismatch (B=300, bf16)"

    # 3) Larger ragged batch exercising balanced even tile count (2 x 1256).
    x_big = jax.random.normal(kx3, (2500, IN_F), dtype=jnp.float32)
    out_big = mlp_forward(x_big, params)
    jax.block_until_ready(out_big)
    assert out_big.shape == (2500, 1), out_big.shape
    assert jnp.allclose(out_big, _reference(x_big, params, jnp.bfloat16),
                        atol=1e-3, rtol=1e-3), "mismatch (B=2500, bf16)"

    # 4) Tiny-batch default path (jnp fallback, no Pallas dispatch).
    out_fb = mlp_forward(x_small, params)
    jax.block_until_ready(out_fb)
    assert out_fb.shape == (8, 1), out_fb.shape

    print("KERNEL_OK")
</pallas_src>

<mosaic_0001>
module attributes {stable_mosaic.version = 11 : i64} {
  func.func @_mlp_kernel(%arg0: i32, %arg1: memref<8x34xf32, #tpu.memory_space<vmem>>, %arg2: memref<34x80xf32, #tpu.memory_space<vmem>>, %arg3: memref<1x80xf32, #tpu.memory_space<vmem>>, %arg4: memref<80x30xf32, #tpu.memory_space<vmem>>, %arg5: memref<1x30xf32, #tpu.memory_space<vmem>>, %arg6: memref<1x30xf32, #tpu.memory_space<vmem>>, %arg7: memref<1x1xf32, #tpu.memory_space<vmem>>, %arg8: memref<8x1xf32, #tpu.memory_space<vmem>>) attributes {dimension_semantics = [#tpu.dimension_semantics<parallel>], iteration_bounds = array<i64: 1>, scalar_prefetch = 0 : i64, scratch_operands = 0 : i64, tpu.core_type = #tpu.core_type<tc>, window_params = [{transform_indices = @transform_0, window_bounds = array<i64: 8, 34>}, {pipeline_mode = #tpu.pipeline_mode<synchronous>, transform_indices = @transform_1, window_bounds = array<i64: 34, 80>}, {pipeline_mode = #tpu.pipeline_mode<synchronous>, transform_indices = @transform_2, window_bounds = array<i64: 1, 80>}, {pipeline_mode = #tpu.pipeline_mode<synchronous>, transform_indices = @transform_3, window_bounds = array<i64: 80, 30>}, {pipeline_mode = #tpu.pipeline_mode<synchronous>, transform_indices = @transform_4, window_bounds = array<i64: 1, 30>}, {pipeline_mode = #tpu.pipeline_mode<synchronous>, transform_indices = @transform_5, window_bounds = array<i64: 1, 30>}, {pipeline_mode = #tpu.pipeline_mode<synchronous>, transform_indices = @transform_6, window_bounds = array<i64: 1, 1>}, {transform_indices = @transform_7, window_bounds = array<i64: 8, 1>}]} {
    %c0 = arith.constant 0 : index
    %c0_0 = arith.constant 0 : index
    %0 = vector.load %arg1[%c0, %c0_0] : memref<8x34xf32, #tpu.memory_space<vmem>>, vector<8x34xf32>
    %c0_1 = arith.constant 0 : index
    %c0_2 = arith.constant 0 : index
    %1 = vector.load %arg2[%c0_1, %c0_2] : memref<34x80xf32, #tpu.memory_space<vmem>>, vector<34x80xf32>
    %cst = arith.constant dense<0.000000e+00> : vector<8x80xf32>
    %2 = tpu.matmul %0, %1, %cst {dimension_numbers = #tpu.dot_dimension_numbers<[1], [0], [0], [1], [0, 0, 1, 1], [], []>} : vector<8x34xf32>, vector<34x80xf32>, vector<8x80xf32> -> vector<8x80xf32>
    %c0_3 = arith.constant 0 : index
    %c0_4 = arith.constant 0 : index
    %3 = vector.load %arg3[%c0_3, %c0_4] : memref<1x80xf32, #tpu.memory_space<vmem>>, vector<1x80xf32>
    %4 = vector.broadcast %3 : vector<1x80xf32> to vector<8x80xf32>
    %5 = arith.addf %2, %4 : vector<8x80xf32>
    %cst_5 = arith.constant 0.000000e+00 : f32
    %6 = vector.broadcast %cst_5 : f32 to vector<8x80xf32>
    %7 = arith.maximumf %5, %6 : vector<8x80xf32>
    %c0_6 = arith.constant 0 : index
    %c0_7 = arith.constant 0 : index
    %8 = vector.load %arg4[%c0_6, %c0_7] : memref<80x30xf32, #tpu.memory_space<vmem>>, vector<80x30xf32>
    %cst_8 = arith.constant dense<0.000000e+00> : vector<8x30xf32>
    %9 = tpu.matmul %7, %8, %cst_8 {dimension_numbers = #tpu.dot_dimension_numbers<[1], [0], [0], [1], [0, 0, 1, 1], [], []>} : vector<8x80xf32>, vector<80x30xf32>, vector<8x30xf32> -> vector<8x30xf32>
    %c0_9 = arith.constant 0 : index
    %c0_10 = arith.constant 0 : index
    %10 = vector.load %arg5[%c0_9, %c0_10] : memref<1x30xf32, #tpu.memory_space<vmem>>, vector<1x30xf32>
    %11 = vector.broadcast %10 : vector<1x30xf32> to vector<8x30xf32>
    %12 = arith.addf %9, %11 : vector<8x30xf32>
    %cst_11 = arith.constant 0.000000e+00 : f32
    %13 = vector.broadcast %cst_11 : f32 to vector<8x30xf32>
    %14 = arith.maximumf %12, %13 : vector<8x30xf32>
    %c0_12 = arith.constant 0 : index
    %c0_13 = arith.constant 0 : index
    %15 = vector.load %arg6[%c0_12, %c0_13] : memref<1x30xf32, #tpu.memory_space<vmem>>, vector<1x30xf32>
    %16 = vector.broadcast %15 : vector<1x30xf32> to vector<8x30xf32>
    %17 = arith.mulf %14, %16 : vector<8x30xf32>
    %cst_14 = arith.constant dense<0.000000e+00> : vector<8xf32>
    %18 = vector.multi_reduction <add>, %17, %cst_14 [1] : vector<8x30xf32> to vector<8xf32>
    %19 = vector.shape_cast %18 : vector<8xf32> to vector<8x1xf32>
    %c0_15 = arith.constant 0 : index
    %c0_16 = arith.constant 0 : index
    %20 = vector.load %arg7[%c0_15, %c0_16] : memref<1x1xf32, #tpu.memory_space<vmem>>, vector<1x1xf32>
    %21 = vector.broadcast %20 : vector<1x1xf32> to vector<8x1xf32>
    %22 = arith.addf %19, %21 : vector<8x1xf32>
    %cst_17 = arith.constant 0.000000e+00 : f32
    %23 = vector.broadcast %cst_17 : f32 to vector<8x1xf32>
    %24 = arith.maximumf %22, %23 : vector<8x1xf32>
    %c0_18 = arith.constant 0 : index
    %c0_19 = arith.constant 0 : index
    %25 = vector.load %arg8[%c0_18, %c0_19] : memref<8x1xf32, #tpu.memory_space<vmem>>, vector<8x1xf32>
    tpu.vector_store %arg8[%c0_18, %c0_19], %24 {strides = array<i32>} : memref<8x1xf32, #tpu.memory_space<vmem>>, vector<8x1xf32>,
    return
  }
  func.func @transform_0(%arg0: i32) -> (i32, i32) {
    %c0_i32 = arith.constant 0 : i32
    %c0_i32_0 = arith.constant 0 : i32
    return %arg0, %c0_i32 : i32, i32
  }
  func.func @transform_1(%arg0: i32) -> (i32, i32) {
    %c0_i32 = arith.constant 0 : i32
    %c0_i32_0 = arith.constant 0 : i32
    %c0_i32_1 = arith.constant 0 : i32
    return %c0_i32, %c0_i32_0 : i32, i32
  }
  func.func @transform_2(%arg0: i32) -> (i32, i32) {
    %c0_i32 = arith.constant 0 : i32
    %c0_i32_0 = arith.constant 0 : i32
    %c0_i32_1 = arith.constant 0 : i32
    return %c0_i32, %c0_i32_0 : i32, i32
  }
  func.func @transform_3(%arg0: i32) -> (i32, i32) {
    %c0_i32 = arith.constant 0 : i32
    %c0_i32_0 = arith.constant 0 : i32
    %c0_i32_1 = arith.constant 0 : i32
    return %c0_i32, %c0_i32_0 : i32, i32
  }
  func.func @transform_4(%arg0: i32) -> (i32, i32) {
    %c0_i32 = arith.constant 0 : i32
    %c0_i32_0 = arith.constant 0 : i32
    %c0_i32_1 = arith.constant 0 : i32
    return %c0_i32, %c0_i32_0 : i32, i32
  }
  func.func @transform_5(%arg0: i32) -> (i32, i32) {
    %c0_i32 = arith.constant 0 : i32
    %c0_i32_0 = arith.constant 0 : i32
    %c0_i32_1 = arith.constant 0 : i32
    return %c0_i32, %c0_i32_0 : i32, i32
  }
  func.func @transform_6(%arg0: i32) -> (i32, i32) {
    %c0_i32 = arith.constant 0 : i32
    %c0_i32_0 = arith.constant 0 : i32
    %c0_i32_1 = arith.constant 0 : i32
    return %c0_i32, %c0_i32_0 : i32, i32
  }
  func.func @transform_7(%arg0: i32) -> (i32, i32) {
    %c0_i32 = arith.constant 0 : i32
    %c0_i32_0 = arith.constant 0 : i32
    return %arg0, %c0_i32 : i32, i32
  }
}

</mosaic_0001>

<llo_original>
// kernel: tpu_custom_call.1
$region0: #{tpu_custom_call.1}
  #allocation0 [shape = 'u32[]', space=smem, size = 0x4, offset = 0x4, fixed_abs, tag = 'smem constant byte address 0x4 - core index']
  #allocation1 [shape = 'u32[144,128]{1,0:T(1,128)}', space=vmem, size = 0x12000, scoped, tag = 'internal scratch']
  #allocation2 [shape = 'f32[1,1]{1,0:T(1,128)S(1)}', space=vmem, size = 0x200, scoped, tag = 'scoped memory for tpu_custom_call.1']
  %s0 = inlined_call_operand.vmem [shape: f32[8,34], index: 0, kind: input, shape index: {}]
  %s1 = inlined_call_operand.vmem [shape: f32[34,80], index: 1, kind: input, shape index: {}]
  %s2 = inlined_call_operand.vmem [shape: f32[1,80], index: 2, kind: input, shape index: {}]
  %s3 = inlined_call_operand.vmem [shape: f32[80,30], index: 3, kind: input, shape index: {}]
  %s4 = inlined_call_operand.vmem [shape: f32[1,30], index: 4, kind: input, shape index: {}]
  %s5 = inlined_call_operand.vmem [shape: f32[1,30], index: 5, kind: input, shape index: {}]
  %s6 = inlined_call_operand.<no memory space> [shape: f32[1,1], index: 6, kind: input, shape index: {}]
  %s7 = inlined_call_operand.vmem [shape: f32[8,1], index: 7, kind: output, shape index: {}]
  %s8 = sld [smem:[#allocation0]]
  $region38: #{tpu_custom_call.1} parent=0
    _
  %s10 = ssub.s32 1, %s8
  %s11 = scalar_select 0, %s10, %s8
  %v12 = vstv %s6
  %13 = vst [vmem:[#allocation2] sm:$0x1] %v12
  // Predicated region
  $region2: #{tpu_custom_call.1} parent=0 // pred_check
    _
  $region3: #{tpu_custom_call.1} parent=0 // pred_check_branch
    %15 = sbr.rel (0) target = $region5
  $region4: #{tpu_custom_call.1} parent=0 // pred_region
    _
  $region5: #{tpu_custom_call.1} parent=0 // pred_fallthru
    _
  // Predicated region
  $region6: #{tpu_custom_call.1} parent=0 // pred_check
    _
  $region7: #{tpu_custom_call.1} parent=0 // pred_check_branch
    %17 = sbr.rel (0) target = $region9
  $region8: #{tpu_custom_call.1} parent=0 // pred_region
    _
  $region9: #{tpu_custom_call.1} parent=0 // pred_fallthru
    _
  // Predicated region
  $region10: #{tpu_custom_call.1} parent=0 // pred_check
    _
  $region11: #{tpu_custom_call.1} parent=0 // pred_check_branch
    %19 = sbr.rel (0) target = $region13
  $region12: #{tpu_custom_call.1} parent=0 // pred_region
    _
  $region13: #{tpu_custom_call.1} parent=0 // pred_fallthru
    _
  // Predicated region
  $region14: #{tpu_custom_call.1} parent=0 // pred_check
    _
  $region15: #{tpu_custom_call.1} parent=0 // pred_check_branch
    %21 = sbr.rel (0) target = $region17
  $region16: #{tpu_custom_call.1} parent=0 // pred_region
    _
  $region17: #{tpu_custom_call.1} parent=0 // pred_fallthru
    _
  // Predicated region
  $region18: #{tpu_custom_call.1} parent=0 // pred_check
    _
  $region19: #{tpu_custom_call.1} parent=0 // pred_check_branch
    %23 = sbr.rel (0) target = $region21
  $region20: #{tpu_custom_call.1} parent=0 // pred_region
    _
  $region21: #{tpu_custom_call.1} parent=0 // pred_fallthru
    _
  // Predicated region
  $region22: #{tpu_custom_call.1} parent=0 // pred_check
    _
  $region23: #{tpu_custom_call.1} parent=0 // pred_check_branch
    %25 = sbr.rel (0) target = $region25
  $region24: #{tpu_custom_call.1} parent=0 // pred_region
    _
  $region25: #{tpu_custom_call.1} parent=0 // pred_fallthru
    _
  // Predicated region
  $region26: #{tpu_custom_call.1} parent=0 // pred_check
    _
  $region27: #{tpu_custom_call.1} parent=0 // pred_check_branch
    %27 = sbr.rel (0) target = $region29
  $region28: #{tpu_custom_call.1} parent=0 // pred_region
    _
  $region29: #{tpu_custom_call.1} parent=0 // pred_fallthru
    _
  %v28 = vld [vmem:[%s0] sm:$0xff]
  %v29 = vld [vmem:[%s1] sm:$0xff]
  %v30 = vld [vmem:[%s1 + $0x8] sm:$0xff]
  %v31 = vld [vmem:[%s1 + $0x10] sm:$0xff]
  %v32 = vld [vmem:[%s1 + $0x18] sm:$0xff]
  %v33 = vld [vmem:[%s1 + $0x20] sm:$0x3]
  %v34 = vld [vmem:[%s2] sm:$0x1]
  %v36 = vlaneseq
  %v37 = vshrl.u32 %v36, 7
  %v38 = vsub.s32 0, %v37
  %v39 = vrot.slane %v34, %v38
  %vm41 = vcmask 277504
  %v43 = vsel %vm41, %v28, 0
  %vm45 = vcmask 1041408
  %v47 = vsel %vm45, %v33, 0
  %49 = vmatprep.subr.mxu0 0.0
  %50 = vmatpush1.msra.mxu0 0.0
  %51 = vmatprep.subr.mxu0 0.0
  %52 = vmatpush1.msra.mxu0 0.0
  %53 = vmatprep.subr.mxu0 0.0
  %54 = vmatpush1.msra.mxu0 0.0
  %55 = vmatprep.subr.mxu0 0.0
  %56 = vmatpush1.msra.mxu0 0.0
  %57 = vmatprep.subr.mxu0 0.0
  %58 = vmatpush1.msra.mxu0 0.0
  %59 = vmatprep.subr.mxu0 0.0
  %60 = vmatpush1.msra.mxu0 0.0
  %61 = vmatprep.subr.mxu0 0.0
  %62 = vmatpush1.msra.mxu0 0.0
  %63 = vmatprep.subr.mxu0 0.0
  %64 = vmatpush1.msra.mxu0 0.0
  %65 = vmatprep.subr.mxu0 0.0
  %66 = vmatpush1.msra.mxu0 0.0
  %67 = vmatprep.subr.mxu0 0.0
  %68 = vmatpush1.msra.mxu0 0.0
  %69 = vmatprep.subr.mxu0 0.0
  %70 = vmatpush1.msra.mxu0 0.0
  %71 = vmatprep.subr.mxu0 0.0
  %72 = vmatpush1.msra.mxu0 %v47
  %73 = vmatprep.subr.mxu0 0.0
  %74 = vmatpush1.msra.mxu0 %v32
  %75 = vmatprep.subr.mxu0 0.0
  %76 = vmatpush1.msra.mxu0 %v31
  %77 = vmatprep.subr.mxu0 0.0
  %78 = vmatpush1.msra.mxu0 %v30
  %79 = vmatprep.subr.mxu0 0.0
  %80 = vmatpush1.msra.mxu0 %v29
  %81 = vmatprep.subr.mxu0 0.0
  %82 = vmatpush2.msra.mxu0 0.0
  %83 = vmatprep.subr.mxu0 0.0
  %84 = vmatpush2.msra.mxu0 0.0
  %85 = vmatprep.subr.mxu0 0.0
  %86 = vmatpush2.msra.mxu0 0.0
  %87 = vmatprep.subr.mxu0 0.0
  %88 = vmatpush2.msra.mxu0 0.0
  %89 = vmatprep.subr.mxu0 0.0
  %90 = vmatpush2.msra.mxu0 0.0
  %91 = vmatprep.subr.mxu0 0.0
  %92 = vmatpush2.msra.mxu0 0.0
  %93 = vmatprep.subr.mxu0 0.0
  %94 = vmatpush2.msra.mxu0 0.0
  %95 = vmatprep.subr.mxu0 0.0
  %96 = vmatpush2.msra.mxu0 0.0
  %97 = vmatprep.subr.mxu0 0.0
  %98 = vmatpush2.msra.mxu0 0.0
  %99 = vmatprep.subr.mxu0 0.0
  %100 = vmatpush2.msra.mxu0 0.0
  %101 = vmatprep.subr.mxu0 0.0
  %102 = vmatpush2.msra.mxu0 0.0
  %103 = vmatprep.subr.mxu0 0.0
  %104 = vmatpush2.msra.mxu0 0.0
  %105 = vmatprep.subr.mxu0 0.0
  %106 = vmatpush2.msra.mxu0 0.0
  %107 = vmatprep.subr.mxu0 0.0
  %108 = vmatpush2.msra.mxu0 0.0
  %109 = vmatprep.subr.mxu0 0.0
  %110 = vmatpush2.msra.mxu0 0.0
  %111 = vmatprep.subr.mxu0 0.0
  %112 = vmatpush2.msra.mxu0 0.0
  %113 = vmatprep.mubr.f32.mxu0 0.0
  %114 = vmatmul.mubr.f32.gmra.mxu0 %v43
  %v115 = vpop.f32.mrf.mxu0
  %v116 = vadd.f32 %v39, %v115
  %v117 = vpop.f32.mrf.mxu0
  %118 = vdwg.mxu0
  %v119 = vmax.f32 %v116, 0.0
  %v120 = vld [vmem:[%s3] sm:$0xff]
  %v121 = vld [vmem:[%s3 + $0x8] sm:$0xff]
  %v122 = vld [vmem:[%s3 + $0x10] sm:$0xff]
  %v123 = vld [vmem:[%s3 + $0x18] sm:$0xff]
  %v124 = vld [vmem:[%s3 + $0x20] sm:$0xff]
  %v125 = vld [vmem:[%s3 + $0x28] sm:$0xff]
  %v126 = vld [vmem:[%s3 + $0x30] sm:$0xff]
  %v127 = vld [vmem:[%s3 + $0x38] sm:$0xff]
  %v128 = vld [vmem:[%s3 + $0x40] sm:$0xff]
  %v129 = vld [vmem:[%s3 + $0x48] sm:$0xff]
  %v130 = vld [vmem:[%s4] sm:$0x1]
  %v132 = vlaneseq
  %v133 = vshrl.u32 %v132, 7
  %v134 = vsub.s32 0, %v133
  %v135 = vrot.slane %v130, %v134
  %vm137 = vcmask 654336
  %v139 = vsel %vm137, %v119, 0
  %141 = vmatprep.subr.mxu0 0.0
  %142 = vmatpush1.msra.mxu0 0.0
  %143 = vmatprep.subr.mxu0 0.0
  %144 = vmatpush1.msra.mxu0 0.0
  %145 = vmatprep.subr.mxu0 0.0
  %146 = vmatpush1.msra.mxu0 0.0
  %147 = vmatprep.subr.mxu0 0.0
  %148 = vmatpush1.msra.mxu0 0.0
  %149 = vmatprep.subr.mxu0 0.0
  %150 = vmatpush1.msra.mxu0 0.0
  %151 = vmatprep.subr.mxu0 0.0
  %152 = vmatpush1.msra.mxu0 0.0
  %153 = vmatprep.subr.mxu0 0.0
  %154 = vmatpush1.msra.mxu0 %v129
  %155 = vmatprep.subr.mxu0 0.0
  %156 = vmatpush1.msra.mxu0 %v128
  %157 = vmatprep.subr.mxu0 0.0
  %158 = vmatpush1.msra.mxu0 %v127
  %159 = vmatprep.subr.mxu0 0.0
  %160 = vmatpush1.msra.mxu0 %v126
  %161 = vmatprep.subr.mxu0 0.0
  %162 = vmatpush1.msra.mxu0 %v125
  %163 = vmatprep.subr.mxu0 0.0
  %164 = vmatpush1.msra.mxu0 %v124
  %165 = vmatprep.subr.mxu0 0.0
  %166 = vmatpush1.msra.mxu0 %v123
  %167 = vmatprep.subr.mxu0 0.0
  %168 = vmatpush1.msra.mxu0 %v122
  %169 = vmatprep.subr.mxu0 0.0
  %170 = vmatpush1.msra.mxu0 %v121
  %171 = vmatprep.subr.mxu0 0.0
  %172 = vmatpush1.msra.mxu0 %v120
  %173 = vmatprep.subr.mxu0 0.0
  %174 = vmatpush2.msra.mxu0 0.0
  %175 = vmatprep.subr.mxu0 0.0
  %176 = vmatpush2.msra.mxu0 0.0
  %177 = vmatprep.subr.mxu0 0.0
  %178 = vmatpush2.msra.mxu0 0.0
  %179 = vmatprep.subr.mxu0 0.0
  %180 = vmatpush2.msra.mxu0 0.0
  %181 = vmatprep.subr.mxu0 0.0
  %182 = vmatpush2.msra.mxu0 0.0
  %183 = vmatprep.subr.mxu0 0.0
  %184 = vmatpush2.msra.mxu0 0.0
  %185 = vmatprep.subr.mxu0 0.0
  %186 = vmatpush2.msra.mxu0 0.0
  %187 = vmatprep.subr.mxu0 0.0
  %188 = vmatpush2.msra.mxu0 0.0
  %189 = vmatprep.subr.mxu0 0.0
  %190 = vmatpush2.msra.mxu0 0.0
  %191 = vmatprep.subr.mxu0 0.0
  %192 = vmatpush2.msra.mxu0 0.0
  %193 = vmatprep.subr.mxu0 0.0
  %194 = vmatpush2.msra.mxu0 0.0
  %195 = vmatprep.subr.mxu0 0.0
  %196 = vmatpush2.msra.mxu0 0.0
  %197 = vmatprep.subr.mxu0 0.0
  %198 = vmatpush2.msra.mxu0 0.0
  %199 = vmatprep.subr.mxu0 0.0
  %200 = vmatpush2.msra.mxu0 0.0
  %201 = vmatprep.subr.mxu0 0.0
  %202 = vmatpush2.msra.mxu0 0.0
  %203 = vmatprep.subr.mxu0 0.0
  %204 = vmatpush2.msra.mxu0 0.0
  %205 = vmatprep.mubr.f32.mxu0 0.0
  %206 = vmatmul.mubr.f32.gmra.mxu0 %v139
  %v207 = vpop.f32.mrf.mxu0
  %v208 = vadd.f32 %v135, %v207
  %v209 = vpop.f32.mrf.mxu0
  %210 = vdwg.mxu0
  %v211 = vmax.f32 %v208, 0.0
  %v212 = vld [vmem:[%s5] sm:$0x1]
  %v214 = vlaneseq
  %v215 = vshrl.u32 %v214, 7
  %v216 = vsub.s32 0, %v215
  %v217 = vrot.slane %v212, %v216
  %v219 = vmul.f32 %v211, %v217
  %vm220 = vcmask 244736
  %v221 = vsel %vm220, %v219, 0.0
  %222 = vadd.xlane.f32.xlu0 %v221
  %v223 = vpop.xlane.xlu0 %222
  %v224 = vld [vmem:[#allocation2] sm:$0x1]
  %v226 = vlaneseq
  %v227 = vshrl.u32 %v226, 7
  %v228 = vsub.s32 0, %v227
  %v229 = vrot.slane %v224, %v228
  %v231 = vadd.f32 %v223, %v229
  %v232 = vmax.f32 %v231, 0.0
  %vm233 = vcmask 7168
  %234 = vst.msk [vmem:[%s7] sm:$0xff] %vm233, %v232
  // Predicated region
  $region30: #{tpu_custom_call.1} parent=0 // pred_check
    _
  $region31: #{tpu_custom_call.1} parent=0 // pred_check_branch
    %236 = sbr.rel (0) target = $region33
  $region32: #{tpu_custom_call.1} parent=0 // pred_region
    _
  $region33: #{tpu_custom_call.1} parent=0 // pred_fallthru
    _
  // Predicated region
  $region34: #{tpu_custom_call.1} parent=0 // pred_check
    _
  $region35: #{tpu_custom_call.1} parent=0 // pred_check_branch
    %238 = sbr.rel (0) target = $region37
  $region36: #{tpu_custom_call.1} parent=0 // pred_region
    _
  $region37: #{tpu_custom_call.1} parent=0 // pred_fallthru
    _

</llo_original>
